<compile_context>
chip_gen: v6e
topology: v6e:2x2x1
jax: 0.10.0
libtpu: 0.0.40
codegen_flags: <defaults>
</compile_context>

<pallas_src>
import functools

import jax
import jax.numpy as jnp
from jax.experimental import pallas as pl
from jax.experimental.pallas import tpu as pltpu


def _lse_kernel(x_ref, lse_ref, m_sc, l_sc, *, tile_cols, total_cols, mask_cols, single_c):
    # x_ref:   (TB, TC) logits block in VMEM (any float dtype; upcast here)
    # lse_ref: (TB, 1)  per-row log-sum-exp output block (f32)
    # m_sc/l_sc: (TB, 1) f32 running max / running sum-exp scratch (online LSE over class tiles)
    j = pl.program_id(1)

    x = x_ref[...].astype(jnp.float32)  # (TB, TC)

    if mask_cols:  # static: only when C % TC != 0
        col = jax.lax.broadcasted_iota(jnp.int32, x.shape, 1) + j * tile_cols
        x = jnp.where(col < total_cols, x, -jnp.inf)

    if single_c:
        # Whole class axis in one tile: plain stable LSE, no scratch round-trip.
        m = jnp.max(x, axis=1, keepdims=True)
        l = jnp.sum(jnp.exp(x - m), axis=1, keepdims=True)
        lse_ref[...] = m + jnp.log(l)
    else:
        @pl.when(j == 0)
        def _():
            m_sc[...] = jnp.full_like(m_sc, -jnp.inf)
            l_sc[...] = jnp.zeros_like(l_sc)

        m_prev = m_sc[...]
        m_new = jnp.maximum(m_prev, jnp.max(x, axis=1, keepdims=True))
        l_sc[...] = l_sc[...] * jnp.exp(m_prev - m_new) + jnp.sum(
            jnp.exp(x - m_new), axis=1, keepdims=True)
        m_sc[...] = m_new

        @pl.when(j == pl.num_programs(1) - 1)
        def _():
            lse_ref[...] = m_sc[...] + jnp.log(l_sc[...])


def cross_entropy(inputs, targets, *, tile_b=None, tile_c=None):
    """inputs: (B, C) float logits (f32 or bf16); targets: (B,) int labels. Returns scalar f32 loss."""
    B, C = inputs.shape
    itemsize = jnp.dtype(inputs.dtype).itemsize
    sub = 8 * max(1, 4 // itemsize)  # native sublane multiple: 8 f32, 16 bf16, 32 int8/fp8

    # ---- class tile: multiple of 128 lanes, or the full extent ----
    MAX_TC = 2048
    if tile_c is not None:
        TC = int(tile_c)
        TC = C if TC >= C else max(128, (TC // 128) * 128)
    else:
        TC = C if C <= MAX_TC else MAX_TC
    TC = min(TC, C)
    num_c = pl.cdiv(C, TC)
    mask_cols = (C % TC) != 0  # only possible when TC < C

    # ---- batch tile from an f32-working-set VMEM budget ----
    # per-row bytes ~ double-buffered input block + ~3 full-tile f32 temporaries (upcast/exp)
    per_row = TC * (2 * itemsize + 3 * 4)
    budget = 16 * 1024 * 1024
    TB = (budget // per_row) if tile_b is None else int(tile_b)
    TB = max(sub, min(1024, (TB // sub) * sub))
    if B <= TB:
        if tile_b is None and B >= 2 * sub:
            # split into >=2 batch tiles so megacore (v7x: 2 TensorCores) has parallel work
            TB = ((pl.cdiv(B, 2) + sub - 1) // sub) * sub
        else:
            TB = B  # single tile; full-extent block is layout-legal
    num_b = pl.cdiv(B, TB)

    # explicit scoped-VMEM limit sized from the real working set (2x safety factor)
    est = (2 * TB * TC * itemsize   # double-buffered logits blocks
           + 2 * TB * 4             # double-buffered lse output block
           + 2 * TB * 4             # m/l scratch
           + 3 * TB * TC * 4)       # f32 upcast / exp temporaries
    vmem_limit = int(min(48 * 1024 * 1024, max(32 * 1024 * 1024, 2 * est)))

    kernel = functools.partial(
        _lse_kernel, tile_cols=TC, total_cols=C,
        mask_cols=mask_cols, single_c=(num_c == 1))

    lse_pad = pl.pallas_call(
        kernel,
        out_shape=jax.ShapeDtypeStruct((num_b * TB, 1), jnp.float32),
        grid=(num_b, num_c),
        in_specs=[pl.BlockSpec((TB, TC), lambda i, j: (i, j))],
        out_specs=pl.BlockSpec((TB, 1), lambda i, j: (i, 0)),
        scratch_shapes=[pltpu.VMEM((TB, 1), jnp.float32),
                        pltpu.VMEM((TB, 1), jnp.float32)],
        compiler_params=pltpu.CompilerParams(
            dimension_semantics=("parallel", "arbitrary"),
            vmem_limit_bytes=vmem_limit,
        ),
    )(inputs)

    # ---- finalize in the wrapper (tiny ops, negligible HBM) ----
    lse = lse_pad[:B, 0]                                   # per-row log-sum-exp
    t = targets.astype(jnp.int32)
    t_clipped = jnp.clip(t, 0, C - 1)
    x_tgt = jnp.take_along_axis(inputs, t_clipped[:, None], axis=1)[:, 0].astype(jnp.float32)
    valid = jnp.logical_and(t >= 0, t < C)                 # invalid labels contribute 0 (reference)
    nll = jnp.where(valid, lse - x_tgt, 0.0)
    return jnp.sum(nll) / jnp.float32(B)


def _reference(inputs, targets):
    xf = inputs.astype(jnp.float32)
    log_probs = jax.nn.log_softmax(xf, axis=1)
    onehot = jax.nn.one_hot(targets, inputs.shape[1], dtype=jnp.float32)
    return jnp.sum(jnp.mean(-onehot * log_probs, axis=0))


if __name__ == "__main__":
    key = jax.random.PRNGKey(0)
    k1, k2, k3, k4, k5, k6, k7, k8 = jax.random.split(key, 8)

    # Case 1: small single-tile problem (B=8, C=32), f32 logits.
    B, C = 8, 32
    logits = jax.random.normal(k1, (B, C), dtype=jnp.float32)
    labels = jax.random.randint(k2, (B,), 0, C, dtype=jnp.int32)
    loss = cross_entropy(logits, labels)
    jax.block_until_ready(loss)
    assert jnp.allclose(loss, _reference(logits, labels), rtol=2e-5, atol=2e-5)

    # Case 2: multi-tile batch grid with a partial last tile (B=20, TB=8 -> 3 tiles).
    B2, C2 = 20, 32
    logits2 = jax.random.normal(k3, (B2, C2), dtype=jnp.float32)
    labels2 = jax.random.randint(k4, (B2,), 0, C2, dtype=jnp.int32)
    loss2 = cross_entropy(logits2, labels2, tile_b=8)
    jax.block_until_ready(loss2)
    assert jnp.allclose(loss2, _reference(logits2, labels2), rtol=2e-5, atol=2e-5)

    # Case 3: bf16 logits with class-axis tiling (C=384, TC=128 -> 3 class tiles, online LSE).
    B3, C3 = 16, 384
    logits3 = jax.random.normal(k5, (B3, C3), dtype=jnp.bfloat16)
    labels3 = jax.random.randint(k6, (B3,), 0, C3, dtype=jnp.int32)
    loss3 = cross_entropy(logits3, labels3, tile_c=128)
    jax.block_until_ready(loss3)
    assert jnp.allclose(loss3, _reference(logits3, labels3), rtol=1e-4, atol=1e-4)

    # Case 4: C not a multiple of the class tile (C=200, TC=128 -> masked partial class tile),
    # plus an auto batch split (B=16 -> 2 tiles of 8) exercising the parallel batch axis.
    B4, C4 = 16, 200
    logits4 = jax.random.normal(k7, (B4, C4), dtype=jnp.float32)
    labels4 = jax.random.randint(k8, (B4,), 0, C4, dtype=jnp.int32)
    loss4 = cross_entropy(logits4, labels4, tile_c=128)
    jax.block_until_ready(loss4)
    assert jnp.allclose(loss4, _reference(logits4, labels4), rtol=2e-5, atol=2e-5)

    print("KERNEL_OK")
</pallas_src>

<mosaic_0001>
module attributes {stable_mosaic.version = 11 : i64} {
  func.func @_lse_kernel(%arg0: i32, %arg1: i32, %arg2: memref<8x32xf32, #tpu.memory_space<vmem>>, %arg3: memref<8x1xf32, #tpu.memory_space<vmem>>, %arg4: memref<8x1xf32, #tpu.memory_space<vmem>>, %arg5: memref<8x1xf32, #tpu.memory_space<vmem>>) attributes {dimension_semantics = [#tpu.dimension_semantics<parallel>, #tpu.dimension_semantics<arbitrary>], iteration_bounds = array<i64: 1, 1>, scalar_prefetch = 0 : i64, scratch_operands = 2 : i64, tpu.core_type = #tpu.core_type<tc>, window_params = [{transform_indices = @transform_0, window_bounds = array<i64: 8, 32>}, {transform_indices = @transform_1, window_bounds = array<i64: 8, 1>}]} {
    %c0 = arith.constant 0 : index
    %c0_0 = arith.constant 0 : index
    %0 = vector.load %arg2[%c0, %c0_0] : memref<8x32xf32, #tpu.memory_space<vmem>>, vector<8x32xf32>
    %cst = arith.constant dense<0xFF800000> : vector<8xf32>
    %1 = vector.multi_reduction <maximumf>, %0, %cst [1] : vector<8x32xf32> to vector<8xf32>
    %2 = vector.shape_cast %1 : vector<8xf32> to vector<8x1xf32>
    %3 = vector.broadcast %2 : vector<8x1xf32> to vector<8x32xf32>
    %4 = arith.subf %0, %3 : vector<8x32xf32>
    %5 = math.exp %4 : vector<8x32xf32>
    %cst_1 = arith.constant dense<0.000000e+00> : vector<8xf32>
    %6 = vector.multi_reduction <add>, %5, %cst_1 [1] : vector<8x32xf32> to vector<8xf32>
    %7 = vector.shape_cast %6 : vector<8xf32> to vector<8x1xf32>
    %8 = math.log %7 : vector<8x1xf32>
    %9 = arith.addf %2, %8 : vector<8x1xf32>
    %c0_2 = arith.constant 0 : index
    %c0_3 = arith.constant 0 : index
    %10 = vector.load %arg3[%c0_2, %c0_3] : memref<8x1xf32, #tpu.memory_space<vmem>>, vector<8x1xf32>
    tpu.vector_store %arg3[%c0_2, %c0_3], %9 {strides = array<i32>} : memref<8x1xf32, #tpu.memory_space<vmem>>, vector<8x1xf32>,
    return
  }
  func.func @transform_0(%arg0: i32, %arg1: i32) -> (i32, i32) {
    %c0_i32 = arith.constant 0 : i32
    return %arg0, %arg1 : i32, i32
  }
  func.func @transform_1(%arg0: i32, %arg1: i32) -> (i32, i32) {
    %c0_i32 = arith.constant 0 : i32
    %c0_i32_0 = arith.constant 0 : i32
    return %arg0, %c0_i32 : i32, i32
  }
}

</mosaic_0001>

<llo_original>
// kernel: tpu_custom_call.1
$region0: #{tpu_custom_call.1}
  #allocation0 [shape = 'u32[]', space=smem, size = 0x4, offset = 0x4, fixed_abs, tag = 'smem constant byte address 0x4 - core index']
  #allocation1 [shape = 'u32[144,128]{1,0:T(1,128)}', space=vmem, size = 0x12000, scoped, tag = 'internal scratch']
  #allocation2 [shape = 'f32[8,1]{1,0:T(8,128)}', space=vmem, size = 0x1000, scoped, tag = 'scratch operand']
  #allocation3 [shape = 'f32[8,1]{1,0:T(8,128)}', space=vmem, size = 0x1000, scoped, tag = 'scratch operand']
  %s0 = inlined_call_operand.hbm [shape: f32[8,32], index: 0, kind: input, shape index: {}]
  %s1 = inlined_call_operand.vmem [shape: f32[8,1], index: 1, kind: output, shape index: {}]
  %s2 = sld [smem:[#allocation0]]
  $region18: #{tpu_custom_call.1} parent=0
    _
  %s4 = ssub.s32 1, %s2
  %s5 = scalar_select 0, %s4, %s2
  $region1: #{tpu_custom_call.1} parent=0
    #allocation4 [shape = 'u8[4096]{0}', space=vmem, size = 0x1000, scoped, tag = 'input window, operand 0, single buffered']
    #allocation5 [shape = 's32[1]{0}', space=sflag, size = 0x4, scoped, tag = 'scoped memory for tpu_custom_call.1']
    %6 = vsyncpa [#allocation5], 0
    // Predicated region
    $region2: #{tpu_custom_call.1} parent=1 // pred_check
      _
    $region3: #{tpu_custom_call.1} parent=1 // pred_check_branch
      %8 = sbr.rel (0) target = $region5
    $region4: #{tpu_custom_call.1} parent=1 // pred_region
      %s10 = ssub.s32 128, 128
      %11 = vsyncadd [#allocation5], %s10
      %s13 = sshll.u32 [#allocation4], 4
      %s14 = int_to_ptr.vmem [resolvable:$true] %s13
      %16 = dma.hbm_to_vmem [thread:$0]  %s0, 128, %s14, [#allocation5]
    $region5: #{tpu_custom_call.1} parent=1 // pred_fallthru
      _
    // Predicated region
    $region6: #{tpu_custom_call.1} parent=1 // pred_check
      _
    $region7: #{tpu_custom_call.1} parent=1 // pred_check_branch
      %18 = sbr.rel (0) target = $region9
    $region8: #{tpu_custom_call.1} parent=1 // pred_region
      %19 = dma.done [#allocation5], 128
    $region9: #{tpu_custom_call.1} parent=1 // pred_fallthru
      _
    %v20 = vld [vmem:[#allocation4] sm:$0xff]
    %vm21 = vcmask 261120
    %v22 = vsel %vm21, %v20, -inf
    %23 = vmax.xlane.f32.xlu0 %v22
    %v24 = vpop.xlane.xlu0 %23
    %v25 = vsub.f32 %v20, %v24
    %v26 = vmul.f32 %v25, 1.442695
    %v27 = vpow.pop %v26
    %v28 = vsel %vm21, %v27, 0.0
    %29 = vadd.xlane.f32.xlu0 %v28
    %v30 = vpop.xlane.xlu0 %29
    %v31 = vlog2.pop %v30
    %v32 = vmul.f32 %v31, 0.6931472
    %v33 = vadd.f32 %v24, %v32
    %vm34 = vcmask 7168
    %35 = vst.msk [vmem:[%s1] sm:$0xff] %vm34, %v33
    // Predicated region
    $region10: #{tpu_custom_call.1} parent=1 // pred_check
      _
    $region11: #{tpu_custom_call.1} parent=1 // pred_check_branch
      %37 = sbr.rel (0) target = $region13
    $region12: #{tpu_custom_call.1} parent=1 // pred_region
      _
    $region13: #{tpu_custom_call.1} parent=1 // pred_fallthru
      _
    // Predicated region
    $region14: #{tpu_custom_call.1} parent=1 // pred_check
      _
    $region15: #{tpu_custom_call.1} parent=1 // pred_check_branch
      %39 = sbr.rel (0) target = $region17
    $region16: #{tpu_custom_call.1} parent=1 // pred_region
      _
    $region17: #{tpu_custom_call.1} parent=1 // pred_fallthru
      _
    %40 = vsyncpa [#allocation5], 1

</llo_original>
